<compile_context>
chip_gen: v5e
topology: v5e:2x2
jax: 0.10.0
libtpu: 0.0.40
codegen_flags: <defaults>
</compile_context>

<pallas_src>
import math

import jax
import jax.numpy as jnp
import numpy as np
from jax.experimental import pallas as pl
from jax.experimental.pallas import tpu as pltpu

_BIG = 1e12

# Minimum sublane multiple per itemsize (packed dtypes need taller tiles).
_SUBLANE_BY_ITEMSIZE = {1: 32, 2: 16, 4: 8, 8: 8}


def _sublane(dtype):
    return _SUBLANE_BY_ITEMSIZE.get(jnp.dtype(dtype).itemsize, 8)


def _round_up(x, m):
    return ((x + m - 1) // m) * m


def _mlcce_kernel(yp_ref, yt_ref, out_ref):
    y_pred = yp_ref[...].astype(jnp.float32)                 # (TB, N) f32
    yt = yt_ref[...]
    is_pos = yt if yt.dtype == jnp.bool_ else (yt != 0)      # (TB, N) bool

    neg_big = jnp.float32(-_BIG)

    # Signed logits: positives contribute -p to the "pos" group, negatives
    # contribute +p to the "neg" group (matches (1 - 2*y_true) * y_pred).
    z = jnp.where(is_pos, -y_pred, y_pred)

    # Per-row group maxima, each floored at 0 (the appended zero logit).
    m_pos = jnp.maximum(
        jnp.max(jnp.where(is_pos, z, neg_big), axis=-1, keepdims=True), 0.0)
    m_neg = jnp.maximum(
        jnp.max(jnp.where(is_pos, neg_big, z), axis=-1, keepdims=True), 0.0)

    # Single exp per element; every element is shifted by its own group's max,
    # so this is exactly the two masked logsumexps of the reference.
    e = jnp.exp(z - jnp.where(is_pos, m_pos, m_neg))          # (TB, N)
    zero = jnp.float32(0.0)
    s_pos = jnp.sum(jnp.where(is_pos, e, zero), axis=-1, keepdims=True) + jnp.exp(-m_pos)
    s_neg = jnp.sum(jnp.where(is_pos, zero, e), axis=-1, keepdims=True) + jnp.exp(-m_neg)

    loss = m_pos + jnp.log(s_pos) + m_neg + jnp.log(s_neg)    # (TB, 1)

    # Lane-dense store: (TB, 1) column -> (1, 1, TB) lane-major slab.
    out_ref[...] = loss.reshape(1, 1, -1)


def multilabel_categorical_crossentropy(y_pred, y_true, *, row_tile=1024):
    """y_pred, y_true: [..., num_classes].  Returns scalar mean loss (f32).

    For best HBM bandwidth pass y_pred as bf16 and y_true as int8/bool; the
    kernel only tests y_true != 0 and computes in f32 internally.
    """
    n = y_pred.shape[-1]
    yp = y_pred.reshape(-1, n)
    yt = y_true.reshape(-1, n)
    b = yp.shape[0]

    # Row-tile granularity: lcm of both inputs' sublane packing requirements.
    sub = math.lcm(_sublane(yp.dtype), _sublane(yt.dtype))

    # Tiny inputs: pad the row axis once so a sublane-aligned block exists
    # (negligible cost; only triggers when b < sub).
    if b < sub:
        yp = jnp.pad(yp, ((0, sub - b), (0, 0)))
        yt = jnp.pad(yt, ((0, sub - b), (0, 0)))
    b_rows = yp.shape[0]

    # Generation-aware VMEM budgeting: v7x has 64 MiB physical VMEM per TC,
    # v5e/v6e have 128 MiB.
    try:
        vmem_cap = int(getattr(pltpu.get_tpu_info(), "vmem_capacity_bytes",
                               64 * 1024 * 1024))
    except Exception:
        vmem_cap = 64 * 1024 * 1024
    if vmem_cap <= 64 * 1024 * 1024:
        tile_budget = 16 * 1024 * 1024      # per-step footprint budget (v7x)
        vmem_limit = 48 * 1024 * 1024
    else:
        tile_budget = 40 * 1024 * 1024      # v5e / v6e (128 MiB physical)
        vmem_limit = 96 * 1024 * 1024

    p_item = jnp.dtype(yp.dtype).itemsize
    t_item = jnp.dtype(yt.dtype).itemsize
    # Per-row VMEM: double-buffered inputs + ~4 block-sized f32 temporaries.
    per_row_bytes = n * (2 * (p_item + t_item) + 4 * 4)
    tile_cap = max(sub, (tile_budget // per_row_bytes) // sub * sub)

    # Keep >=2 grid steps so both v7x TensorCores get work on small batches.
    tile_two_steps = _round_up(pl.cdiv(b_rows, 2), sub)

    tile = min(row_tile, tile_cap, tile_two_steps, (b_rows // sub) * sub)
    tile = max(sub, (tile // sub) * sub)

    num_blocks = pl.cdiv(b_rows, tile)

    # TODO(synk): for very large num_classes (a (sub, N) block + temporaries no
    # longer fits VMEM) add a second "arbitrary" grid axis over N with an
    # online-logsumexp carry in VMEM scratch, finalized with pl.when.

    cost = pl.CostEstimate(
        flops=10 * b_rows * n,
        transcendentals=b_rows * (n + 4),
        bytes_accessed=b_rows * n * (p_item + t_item) + num_blocks * tile * 4,
    )

    per_row = pl.pallas_call(
        _mlcce_kernel,
        out_shape=jax.ShapeDtypeStruct((num_blocks, 1, tile), jnp.float32),
        grid_spec=pltpu.PrefetchScalarGridSpec(
            num_scalar_prefetch=0,
            grid=(num_blocks,),
            in_specs=[
                pl.BlockSpec((tile, n), lambda i: (i, 0)),
                pl.BlockSpec((tile, n), lambda i: (i, 0)),
            ],
            out_specs=pl.BlockSpec((1, 1, tile), lambda i: (i, 0, 0)),
        ),
        compiler_params=pltpu.CompilerParams(
            dimension_semantics=("parallel",),
            vmem_limit_bytes=vmem_limit,
        ),
        cost_estimate=cost,
    )(yp, yt)

    # Drop padded / OOB rows, then reduce to the scalar mean outside the kernel.
    return jnp.mean(per_row.reshape(-1)[:b])


def _reference(y_pred, y_true):
    y_pred = (1.0 - 2.0 * y_true) * y_pred
    y_pred_pos = y_pred - (1.0 - y_true) * _BIG
    y_pred_neg = y_pred - y_true * _BIG
    zeros = jnp.zeros_like(y_pred_pos[..., :1])
    y_pred_pos = jnp.concatenate([y_pred_pos, zeros], axis=-1)
    y_pred_neg = jnp.concatenate([y_pred_neg, zeros], axis=-1)
    pos_loss = jax.nn.logsumexp(y_pred_pos, axis=-1)
    neg_loss = jax.nn.logsumexp(y_pred_neg, axis=-1)
    return jnp.mean(pos_loss + neg_loss)


if __name__ == "__main__":
    key = jax.random.PRNGKey(0)
    k1, k2, k3, k4, k5, k6 = jax.random.split(key, 6)

    # Test 1: f32 logits / f32 {0,1} labels (the original PyTorch contract).
    b1, s1, c1 = 2, 8, 128
    yp1 = jax.random.normal(k1, (b1, s1, c1), dtype=jnp.float32) * 3.0
    yt1 = (jax.random.uniform(k2, (b1, s1, c1)) < 0.1).astype(jnp.float32)
    loss1 = jax.block_until_ready(multilabel_categorical_crossentropy(yp1, yt1))
    np.testing.assert_allclose(np.asarray(loss1), np.asarray(_reference(yp1, yt1)),
                               rtol=1e-5, atol=1e-5)

    # Test 2: bandwidth-optimal narrow contract (bf16 logits, int8 labels).
    b2, s2, c2 = 4, 16, 256
    yp2 = (jax.random.normal(k3, (b2, s2, c2), dtype=jnp.float32) * 3.0).astype(jnp.bfloat16)
    yt2 = (jax.random.uniform(k4, (b2, s2, c2)) < 0.1).astype(jnp.int8)
    loss2 = jax.block_until_ready(multilabel_categorical_crossentropy(yp2, yt2))
    ref2 = _reference(yp2.astype(jnp.float32), yt2.astype(jnp.float32))
    np.testing.assert_allclose(np.asarray(loss2), np.asarray(ref2),
                               rtol=1e-4, atol=1e-4)

    # Test 3: row count not divisible by the tile (partial last block / OOB reads).
    b3, s3, c3 = 3, 5, 128
    yp3 = jax.random.normal(k5, (b3, s3, c3), dtype=jnp.float32) * 2.0
    yt3 = (jax.random.uniform(k6, (b3, s3, c3)) < 0.2).astype(jnp.float32)
    loss3 = jax.block_until_ready(multilabel_categorical_crossentropy(yp3, yt3))
    np.testing.assert_allclose(np.asarray(loss3), np.asarray(_reference(yp3, yt3)),
                               rtol=1e-5, atol=1e-5)

    print("KERNEL_OK")
</pallas_src>

<mosaic_0001>
module attributes {stable_mosaic.version = 11 : i64} {
  func.func @_mlcce_kernel(%arg0: i32, %arg1: memref<8x128xf32, #tpu.memory_space<vmem>>, %arg2: memref<8x128xf32, #tpu.memory_space<vmem>>, %arg3: memref<1x1x8xf32, #tpu.memory_space<vmem>>) attributes {dimension_semantics = [#tpu.dimension_semantics<parallel>], iteration_bounds = array<i64: 2>, scalar_prefetch = 0 : i64, scratch_operands = 0 : i64, tpu.core_type = #tpu.core_type<tc>, window_params = [{transform_indices = @transform_0, window_bounds = array<i64: 8, 128>}, {transform_indices = @transform_1, window_bounds = array<i64: 8, 128>}, {transform_indices = @transform_2, window_bounds = array<i64: 1, 1, 8>}]} {
    %c0 = arith.constant 0 : index
    %c0_0 = arith.constant 0 : index
    %0 = vector.load %arg1[%c0, %c0_0] : memref<8x128xf32, #tpu.memory_space<vmem>>, vector<8x128xf32>
    %c0_1 = arith.constant 0 : index
    %c0_2 = arith.constant 0 : index
    %1 = vector.load %arg2[%c0_1, %c0_2] : memref<8x128xf32, #tpu.memory_space<vmem>>, vector<8x128xf32>
    %cst = arith.constant 0.000000e+00 : f32
    %2 = vector.broadcast %cst : f32 to vector<8x128xf32>
    %3 = arith.cmpf one, %1, %2 : vector<8x128xf32>
    %cst_3 = arith.constant 0.000000e+00 : f32
    %4 = vector.broadcast %cst_3 : f32 to vector<8x128xf32>
    %5 = arith.subf %4, %0 : vector<8x128xf32>
    %6 = arith.select %3, %5, %0 : vector<8x128xi1>, vector<8x128xf32>
    %cst_4 = arith.constant -9.99999995E+11 : f32
    %7 = vector.broadcast %cst_4 : f32 to vector<8x128xf32>
    %8 = arith.select %3, %6, %7 : vector<8x128xi1>, vector<8x128xf32>
    %cst_5 = arith.constant dense<0xFF800000> : vector<8xf32>
    %9 = vector.multi_reduction <maximumf>, %8, %cst_5 [1] : vector<8x128xf32> to vector<8xf32>
    %10 = vector.shape_cast %9 : vector<8xf32> to vector<8x1xf32>
    %cst_6 = arith.constant 0.000000e+00 : f32
    %11 = vector.broadcast %cst_6 : f32 to vector<8x1xf32>
    %12 = arith.maximumf %10, %11 : vector<8x1xf32>
    %cst_7 = arith.constant -9.99999995E+11 : f32
    %13 = vector.broadcast %cst_7 : f32 to vector<8x128xf32>
    %14 = arith.select %3, %13, %6 : vector<8x128xi1>, vector<8x128xf32>
    %cst_8 = arith.constant dense<0xFF800000> : vector<8xf32>
    %15 = vector.multi_reduction <maximumf>, %14, %cst_8 [1] : vector<8x128xf32> to vector<8xf32>
    %16 = vector.shape_cast %15 : vector<8xf32> to vector<8x1xf32>
    %cst_9 = arith.constant 0.000000e+00 : f32
    %17 = vector.broadcast %cst_9 : f32 to vector<8x1xf32>
    %18 = arith.maximumf %16, %17 : vector<8x1xf32>
    %19 = vector.shape_cast %12 : vector<8x1xf32> to vector<8x1xf32>
    %20 = vector.broadcast %19 : vector<8x1xf32> to vector<8x128xf32>
    %21 = vector.shape_cast %18 : vector<8x1xf32> to vector<8x1xf32>
    %22 = vector.broadcast %21 : vector<8x1xf32> to vector<8x128xf32>
    %23 = arith.select %3, %20, %22 : vector<8x128xi1>, vector<8x128xf32>
    %24 = arith.subf %6, %23 : vector<8x128xf32>
    %25 = math.exp %24 : vector<8x128xf32>
    %cst_10 = arith.constant 0.000000e+00 : f32
    %26 = vector.broadcast %cst_10 : f32 to vector<8x128xf32>
    %27 = arith.select %3, %25, %26 : vector<8x128xi1>, vector<8x128xf32>
    %cst_11 = arith.constant dense<0.000000e+00> : vector<8xf32>
    %28 = vector.multi_reduction <add>, %27, %cst_11 [1] : vector<8x128xf32> to vector<8xf32>
    %29 = vector.shape_cast %28 : vector<8xf32> to vector<8x1xf32>
    %cst_12 = arith.constant 0.000000e+00 : f32
    %30 = vector.broadcast %cst_12 : f32 to vector<8x1xf32>
    %31 = arith.subf %30, %12 : vector<8x1xf32>
    %32 = math.exp %31 : vector<8x1xf32>
    %33 = arith.addf %29, %32 : vector<8x1xf32>
    %cst_13 = arith.constant 0.000000e+00 : f32
    %34 = vector.broadcast %cst_13 : f32 to vector<8x128xf32>
    %35 = arith.select %3, %34, %25 : vector<8x128xi1>, vector<8x128xf32>
    %cst_14 = arith.constant dense<0.000000e+00> : vector<8xf32>
    %36 = vector.multi_reduction <add>, %35, %cst_14 [1] : vector<8x128xf32> to vector<8xf32>
    %37 = vector.shape_cast %36 : vector<8xf32> to vector<8x1xf32>
    %cst_15 = arith.constant 0.000000e+00 : f32
    %38 = vector.broadcast %cst_15 : f32 to vector<8x1xf32>
    %39 = arith.subf %38, %18 : vector<8x1xf32>
    %40 = math.exp %39 : vector<8x1xf32>
    %41 = arith.addf %37, %40 : vector<8x1xf32>
    %42 = math.log %33 : vector<8x1xf32>
    %43 = arith.addf %12, %42 : vector<8x1xf32>
    %44 = arith.addf %43, %18 : vector<8x1xf32>
    %45 = math.log %41 : vector<8x1xf32>
    %46 = arith.addf %44, %45 : vector<8x1xf32>
    %47 = vector.shape_cast %46 : vector<8x1xf32> to vector<1x1x8xf32>
    %c0_16 = arith.constant 0 : index
    %c0_17 = arith.constant 0 : index
    %c0_18 = arith.constant 0 : index
    %48 = vector.load %arg3[%c0_16, %c0_17, %c0_18] : memref<1x1x8xf32, #tpu.memory_space<vmem>>, vector<1x1x8xf32>
    tpu.vector_store %arg3[%c0_16, %c0_17, %c0_18], %47 {strides = array<i32>} : memref<1x1x8xf32, #tpu.memory_space<vmem>>, vector<1x1x8xf32>,
    return
  }
  func.func @transform_0(%arg0: i32) -> (i32, i32) {
    %c0_i32 = arith.constant 0 : i32
    %c0_i32_0 = arith.constant 0 : i32
    return %arg0, %c0_i32 : i32, i32
  }
  func.func @transform_1(%arg0: i32) -> (i32, i32) {
    %c0_i32 = arith.constant 0 : i32
    %c0_i32_0 = arith.constant 0 : i32
    return %arg0, %c0_i32 : i32, i32
  }
  func.func @transform_2(%arg0: i32) -> (i32, i32, i32) {
    %c0_i32 = arith.constant 0 : i32
    %c0_i32_0 = arith.constant 0 : i32
    %c0_i32_1 = arith.constant 0 : i32
    return %arg0, %c0_i32, %c0_i32_0 : i32, i32, i32
  }
}

</mosaic_0001>

<llo_original>
// kernel: tpu_custom_call.1
$region0: #{tpu_custom_call.1}
  #allocation0 [shape = 'u32[]', space=smem, size = 0x4, offset = 0x4, fixed_abs, tag = 'smem constant byte address 0x4 - core index']
  #allocation1 [shape = 'u32[72,128]{1,0:T(1,128)}', space=vmem, size = 0x9000, scoped, tag = 'internal scratch']
  %s0 = inlined_call_operand.hbm [shape: f32[16,128], index: 0, kind: input, shape index: {}]
  %s1 = inlined_call_operand.hbm [shape: f32[16,128], index: 1, kind: input, shape index: {}]
  %s2 = inlined_call_operand.hbm [shape: f32[2,1,8], index: 2, kind: output, shape index: {}]
  %s3 = sld [smem:[#allocation0]]
  $region49: #{tpu_custom_call.1} parent=0
    _
  %s5 = ssub.s32 1, %s3
  %s6 = scalar_select 0, %s5, %s3
  $region1: #{tpu_custom_call.1} parent=0
    #allocation2 [shape = 'u8[8192]{0}', space=vmem, size = 0x2000, scoped, tag = 'input window, operand 0']
    #allocation3 [shape = 's32[2]{0}', space=sflag, size = 0x8, scoped, tag = 'scoped memory for tpu_custom_call.1']
    #allocation4 [shape = 's32[2]{0}', space=sflag, size = 0x8, scoped, tag = 'scoped memory for tpu_custom_call.1']
    #allocation5 [shape = 'u8[8192]{0}', space=vmem, size = 0x2000, scoped, tag = 'input window, operand 1']
    #allocation6 [shape = 's32[2]{0}', space=sflag, size = 0x8, scoped, tag = 'scoped memory for tpu_custom_call.1']
    #allocation7 [shape = 'u8[1024]{0}', space=vmem, size = 0x400, scoped, tag = 'output window, operand 0']
    %7 = vsyncpa [#allocation3], 0
    %s8 = scalar_lea.sflag [#allocation3], 1
    %9 = vsyncpa %s8, 0
    %10 = vsyncpa [#allocation6], 0
    %s11 = scalar_lea.sflag [#allocation6], 1
    %12 = vsyncpa %s11, 0
    %13 = vsyncpa [#allocation4], 0
    %s14 = scalar_lea.sflag [#allocation4], 1
    %15 = vsyncpa %s14, 0
    loop: start=0, step=1, limit=4
    $region2: #{tpu_custom_call.1} parent=1 // loop_pre_header
      _
    $region3: #{tpu_custom_call.1} parent=1 // loop_header
      %s17 = sphi 0, %s21
      %p18 = scmp.ge.s32.totalorder %s17, 4
      %s27 = sphi 0, %s29
      %s30 = sphi 0, %s27
      %s31 = sphi 0, %s30
      %s47 = sphi 0, %s31
      %s53 = sphi 0, %s55
      %s56 = sphi 0, %s53
      %s57 = sphi 0, %s56
      %s73 = sphi 0, %s57
      %s79 = sphi 0, %s81
      %s82 = sphi 0, %s79
      %s83 = sphi 0, %s82
      %s99 = sphi 0, %s83
    $region4: #{tpu_custom_call.1} parent=1 // loop_header_branch
      %20 = sbr.rel (%p18) target = $region8
    $region5: #{tpu_custom_call.1} parent=1 // loop_body
      %s22 = ssub.s32 %s17, 1
      %s23 = ssub.s32 %s17, 2
      %s24 = sadd.s32 %s17, 1
      %s25 = ssub.s32 %s17, %s24
      %p26 = scmp.eq.s32.totalorder %s25, 0
      %s28 = sadd.s32 %s27, 1
      %s29 = scalar_select %p26, %s27, %s28
      %p32 = pneg %p26
      %p33 = scmp.eq.s32.totalorder %s17, 1
      %p34 = por %p32, %p33
      %p35 = scmp.ne.s32.totalorder %s27, %s30
      %p36 = scmp.eq.s32.totalorder %s17, 0
      %p37 = por %p35, %p36
      %p38 = scmp.ne.s32.totalorder %s27, %s30
      %p39 = scmp.eq.s32.totalorder %s22, 1
      %p40 = por %p38, %p39
      %p41 = scmp.ne.s32.totalorder %s30, %s31
      %p42 = scmp.eq.s32.totalorder %s22, 0
      %p43 = por %p41, %p42
      %p44 = scmp.ne.s32.totalorder %s30, %s31
      %p45 = scmp.eq.s32.totalorder %s23, 1
      %p46 = por %p44, %p45
      %p48 = scmp.ne.s32.totalorder %s31, %s47
      %p49 = scmp.eq.s32.totalorder %s23, 0
      %p50 = por %p48, %p49
      %s51 = ssub.s32 %s17, %s24
      %p52 = scmp.eq.s32.totalorder %s51, 0
      %s54 = sadd.s32 %s53, 1
      %s55 = scalar_select %p52, %s53, %s54
      %p58 = pneg %p52
      %p59 = scmp.eq.s32.totalorder %s17, 1
      %p60 = por %p58, %p59
      %p61 = scmp.ne.s32.totalorder %s53, %s56
      %p62 = scmp.eq.s32.totalorder %s17, 0
      %p63 = por %p61, %p62
      %p64 = scmp.ne.s32.totalorder %s53, %s56
      %p65 = scmp.eq.s32.totalorder %s22, 1
      %p66 = por %p64, %p65
      %p67 = scmp.ne.s32.totalorder %s56, %s57
      %p68 = scmp.eq.s32.totalorder %s22, 0
      %p69 = por %p67, %p68
      %p70 = scmp.ne.s32.totalorder %s56, %s57
      %p71 = scmp.eq.s32.totalorder %s23, 1
      %p72 = por %p70, %p71
      %p74 = scmp.ne.s32.totalorder %s57, %s73
      %p75 = scmp.eq.s32.totalorder %s23, 0
      %p76 = por %p74, %p75
      %s77 = ssub.s32 %s17, %s24
      %p78 = scmp.eq.s32.totalorder %s77, 0
      %s80 = sadd.s32 %s79, 1
      %s81 = scalar_select %p78, %s79, %s80
      %p84 = pneg %p78
      %p85 = scmp.eq.s32.totalorder %s17, 1
      %p86 = por %p84, %p85
      %p87 = scmp.ne.s32.totalorder %s79, %s82
      %p88 = scmp.eq.s32.totalorder %s17, 0
      %p89 = por %p87, %p88
      %p90 = scmp.ne.s32.totalorder %s79, %s82
      %p91 = scmp.eq.s32.totalorder %s22, 1
      %p92 = por %p90, %p91
      %p93 = scmp.ne.s32.totalorder %s82, %s83
      %p94 = scmp.eq.s32.totalorder %s22, 0
      %p95 = por %p93, %p94
      %p96 = scmp.ne.s32.totalorder %s82, %s83
      %p97 = scmp.eq.s32.totalorder %s23, 1
      %p98 = por %p96, %p97
      %p100 = scmp.ne.s32.totalorder %s83, %s99
      %p101 = scmp.eq.s32.totalorder %s23, 0
      %p102 = por %p100, %p101
      %p103 = scmp.le.s32.totalorder 1, %s17
      %p104 = scmp.lt.s32.totalorder %s17, 3
      %p105 = pnand %p103, %p104
      %p106 = pneg %p105
      // Predicated region
      $region9: #{tpu_custom_call.1} parent=5 // pred_check
        _
      $region10: #{tpu_custom_call.1} parent=5 // pred_check_branch
        %108 = sbr.rel (%p105) target = $region12
      $region11: #{tpu_custom_call.1} parent=5 // pred_region
        %s109 = ssub.s32 %s17, 1
      $region12: #{tpu_custom_call.1} parent=5 // pred_fallthru
        _
      %p110 = scmp.lt.s32.totalorder %s17, 2
      // Predicated region
      $region13: #{tpu_custom_call.1} parent=5 // pred_check
        %p111 = pneg %p110
      $region14: #{tpu_custom_call.1} parent=5 // pred_check_branch
        %113 = sbr.rel (%p111) target = $region16
      $region15: #{tpu_custom_call.1} parent=5 // pred_region
        // Predicated region
        $region17: #{tpu_custom_call.1} parent=15 // pred_check
          %p114 = pneg %p37
        $region18: #{tpu_custom_call.1} parent=15 // pred_check_branch
          %116 = sbr.rel (%p114) target = $region20
        $region19: #{tpu_custom_call.1} parent=15 // pred_region
          %s117 = sand.u32 %s27, 1
          %s118 = scalar_lea.sflag [#allocation3], %s117
          %s119 = sand.u32 %s27, 1
          %s120 = smul.addr %s119, 8
          %s121 = scalar_lea.vmem [#allocation2], %s120
          %123 = vsyncadd %s118, 0
          %s124 = smul.addr %s17, 8
          %s125 = scalar_lea.hbm %s0, %s124
          %s127 = sshll.u32 %s125, 4
          %s128 = int_to_ptr.hbm [resolvable:$true] %s127
          %s129 = sshll.u32 %s121, 4
          %s130 = int_to_ptr.vmem [resolvable:$true] %s129
          %132 = dma.hbm_to_vmem [thread:$0]  %s128, 128, %s130, %s118
        $region20: #{tpu_custom_call.1} parent=15 // pred_fallthru
          _
        // Predicated region
        $region21: #{tpu_custom_call.1} parent=15 // pred_check
          %p133 = pneg %p63
        $region22: #{tpu_custom_call.1} parent=15 // pred_check_branch
          %135 = sbr.rel (%p133) target = $region24
        $region23: #{tpu_custom_call.1} parent=15 // pred_region
          %s136 = sand.u32 %s53, 1
          %s137 = scalar_lea.sflag [#allocation6], %s136
          %s138 = sand.u32 %s53, 1
          %s139 = smul.addr %s138, 8
          %s140 = scalar_lea.vmem [#allocation5], %s139
          %142 = vsyncadd %s137, 0
          %s143 = smul.addr %s17, 8
          %s144 = scalar_lea.hbm %s1, %s143
          %s146 = sshll.u32 %s144, 4
          %s147 = int_to_ptr.hbm [resolvable:$true] %s146
          %s148 = sshll.u32 %s140, 4
          %s149 = int_to_ptr.vmem [resolvable:$true] %s148
          %151 = dma.hbm_to_vmem [thread:$0]  %s147, 128, %s149, %s137
        $region24: #{tpu_custom_call.1} parent=15 // pred_fallthru
          _
      $region16: #{tpu_custom_call.1} parent=5 // pred_fallthru
        _
      %p152 = scmp.le.s32.totalorder 1, %s17
      %p153 = scmp.lt.s32.totalorder %s17, 3
      %p154 = pnand %p152, %p153
      %p155 = pneg %p154
      // Predicated region
      $region25: #{tpu_custom_call.1} parent=5 // pred_check
        _
      $region26: #{tpu_custom_call.1} parent=5 // pred_check_branch
        %157 = sbr.rel (%p154) target = $region28
      $region27: #{tpu_custom_call.1} parent=5 // pred_region
        %s158 = ssub.s32 %s17, 1
        %s159 = sand.u32 %s30, 1
        %s160 = scalar_lea.sflag [#allocation3], %s159
        %s161 = sand.u32 %s30, 1
        %s162 = smul.addr %s161, 8
        %s163 = scalar_lea.vmem [#allocation2], %s162
        // Predicated region
        $region29: #{tpu_custom_call.1} parent=27 // pred_check
          %p164 = pneg %p43
        $region30: #{tpu_custom_call.1} parent=27 // pred_check_branch
          %166 = sbr.rel (%p164) target = $region32
        $region31: #{tpu_custom_call.1} parent=27 // pred_region
          %168 = dma.done %s160, 128
        $region32: #{tpu_custom_call.1} parent=27 // pred_fallthru
          _
        %s169 = sand.u32 %s56, 1
        %s170 = scalar_lea.sflag [#allocation6], %s169
        %s171 = sand.u32 %s56, 1
        %s172 = smul.addr %s171, 8
        %s173 = scalar_lea.vmem [#allocation5], %s172
        // Predicated region
        $region33: #{tpu_custom_call.1} parent=27 // pred_check
          %p174 = pneg %p69
        $region34: #{tpu_custom_call.1} parent=27 // pred_check_branch
          %176 = sbr.rel (%p174) target = $region36
        $region35: #{tpu_custom_call.1} parent=27 // pred_region
          %178 = dma.done %s170, 128
        $region36: #{tpu_custom_call.1} parent=27 // pred_fallthru
          _
        %s179 = sand.u32 %s30, 1
        %s180 = scalar_lea.sflag [#allocation3], %s179
        %s181 = sand.u32 %s30, 1
        %s182 = smul.addr %s181, 8
        %s183 = scalar_lea.vmem [#allocation2], %s182
        %p184 = pneg %p43
        %p185 = pneg %p40
        %s186 = sand.u32 %s56, 1
        %s187 = scalar_lea.sflag [#allocation6], %s186
        %s188 = sand.u32 %s56, 1
        %s189 = smul.addr %s188, 8
        %s190 = scalar_lea.vmem [#allocation5], %s189
        %p191 = pneg %p69
        %p192 = pneg %p66
        %p193 = pneg %p95
        %p194 = pneg %p92
        %s195 = sand.u32 %s82, 1
        %s196 = scalar_lea.sflag [#allocation4], %s195
        %s197 = sand.u32 %s82, 1
        %s198 = scalar_lea.vmem [#allocation7], %s197
        %v199 = vld [vmem:[%s163] sm:$0xff]
        %v200 = vld [vmem:[%s173] sm:$0xff]
        %vm201 = vcmp.ne.f32.partialorder %v200, 0.0
        %v202 = vsub.f32 0.0, %v199
        %v203 = vsel %vm201, %v202, %v199
        %v204 = vsel %vm201, %v202, -1e+12
        %205 = vmax.xlane.f32.xlu0 %v204
        %v206 = vpop.xlane.xlu0 %205
        %v207 = vmax.f32 %v206, 0.0
        %v208 = vsel %vm201, -1e+12, %v199
        %209 = vmax.xlane.f32.xlu0 %v208
        %v210 = vpop.xlane.xlu0 %209
        %v211 = vmax.f32 %v210, 0.0
        %v212 = vsel %vm201, %v207, %v211
        %v213 = vsub.f32 %v203, %v212
        %v214 = vmul.f32 %v213, 1.442695
        %v215 = vpow.pop %v214
        %v216 = vsel %vm201, %v215, 0.0
        %217 = vadd.xlane.f32.xlu0 %v216
        %v218 = vpop.xlane.xlu0 %217
        %v219 = vsub.f32 0.0, %v207
        %v220 = vmul.f32 %v219, 1.442695
        %v221 = vpow.pop %v220
        %v222 = vadd.f32 %v218, %v221
        %v223 = vsel %vm201, 0.0, %v215
        %224 = vadd.xlane.f32.xlu0 %v223
        %v225 = vpop.xlane.xlu0 %224
        %v226 = vsub.f32 0.0, %v211
        %v227 = vmul.f32 %v226, 1.442695
        %v228 = vpow.pop %v227
        %v229 = vadd.f32 %v225, %v228
        %v230 = vlog2.pop %v222
        %v231 = vmul.f32 %v230, 0.6931472
        %v232 = vadd.f32 %v207, %v231
        %v233 = vadd.f32 %v232, %v211
        %v234 = vlog2.pop %v229
        %v235 = vmul.f32 %v234, 0.6931472
        %v236 = vadd.f32 %v233, %v235
        %v238 = vlaneseq
        %v239 = vand.u32 %v238, 127
        %v240 = vperm.slane %v236, %v239
        %vm242 = vcmask 57344
        %243 = vst.msk [vmem:[%s198] sm:$0x1] %vm242, %v240
        %s244 = sand.u32 %s82, 1
        %s245 = scalar_lea.sflag [#allocation4], %s244
        %s246 = sand.u32 %s82, 1
        %s247 = scalar_lea.vmem [#allocation7], %s246
        // Predicated region
        $region37: #{tpu_custom_call.1} parent=27 // pred_check
          %p248 = pneg %p92
        $region38: #{tpu_custom_call.1} parent=27 // pred_check_branch
          %250 = sbr.rel (%p248) target = $region40
        $region39: #{tpu_custom_call.1} parent=27 // pred_region
          %252 = vsyncadd %s245, 0
          %s253 = scalar_lea.hbm %s2, %s22
          %s255 = sshll.u32 %s247, 4
          %s256 = int_to_ptr.vmem [resolvable:$true] %s255
          %s257 = sshll.u32 %s253, 4
          %s258 = int_to_ptr.hbm [resolvable:$true] %s257
          %260 = dma.vmem_to_hbm [thread:$0]  %s256, 16, %s258, %s245
        $region40: #{tpu_custom_call.1} parent=27 // pred_fallthru
          _
      $region28: #{tpu_custom_call.1} parent=5 // pred_fallthru
        _
      %p261 = scmp.le.s32.totalorder 2, %s17
      // Predicated region
      $region41: #{tpu_custom_call.1} parent=5 // pred_check
        %p262 = pneg %p261
      $region42: #{tpu_custom_call.1} parent=5 // pred_check_branch
        %264 = sbr.rel (%p262) target = $region44
      $region43: #{tpu_custom_call.1} parent=5 // pred_region
        %s265 = ssub.s32 %s17, 2
        // Predicated region
        $region45: #{tpu_custom_call.1} parent=43 // pred_check
          %p266 = pneg %p98
        $region46: #{tpu_custom_call.1} parent=43 // pred_check_branch
          %268 = sbr.rel (%p266) target = $region48
        $region47: #{tpu_custom_call.1} parent=43 // pred_region
          %s269 = sand.u32 %s83, 1
          %s270 = scalar_lea.sflag [#allocation4], %s269
          %s271 = sand.u32 %s83, 1
          %s272 = scalar_lea.vmem [#allocation7], %s271
          %274 = dma.done %s270, 16
        $region48: #{tpu_custom_call.1} parent=43 // pred_fallthru
          _
      $region44: #{tpu_custom_call.1} parent=5 // pred_fallthru
        _
    $region6: #{tpu_custom_call.1} parent=1 // loop_footer
      %s21 = sadd.s32 1, %s17
    $region7: #{tpu_custom_call.1} parent=1 // loop_footer_branch
      %16 = sbr.rel target = $region3
    $region8: #{tpu_custom_call.1} parent=1 // loop_exit
      _
    %275 = vsyncpa [#allocation3], 1
    %s276 = scalar_lea.sflag [#allocation3], 1
    %277 = vsyncpa %s276, 1
    %278 = vsyncpa [#allocation6], 1
    %s279 = scalar_lea.sflag [#allocation6], 1
    %280 = vsyncpa %s279, 1
    %281 = vsyncpa [#allocation4], 1
    %s282 = scalar_lea.sflag [#allocation4], 1
    %283 = vsyncpa %s282, 1

</llo_original>
